<compile_context>
chip_gen: v7x
topology: tpu7x:2x2x1
jax: 0.10.0
libtpu: 0.0.40
codegen_flags: <defaults>
</compile_context>

<pallas_src>
import functools

import jax
import jax.numpy as jnp
from jax.experimental import pallas as pl
from jax.experimental.pallas import tpu as pltpu

BN_EPS = 1e-5
LANES = 128
TB_CAP = 1024


# --------------------------------------------------------------------------------------
# Kernel helpers (shared by both paths)
# --------------------------------------------------------------------------------------
def _unpack_vecs(vecs_ref):
    b1 = vecs_ref[0:1, :]
    gamma = vecs_ref[1:2, :]
    beta = vecs_ref[2:3, :]
    b2 = vecs_ref[3:4, :]      # padded to 128 lanes (zeros past fc2_units)
    b3 = vecs_ref[4:5, :]      # padded to 128 lanes (zeros past action_size)
    return b1, gamma, beta, b2, b3


def _fc1_relu(x_ref, w1_ref, b1):
    # x is already bf16 (wrapper cast); f32 MXU accumulation.
    h1 = jnp.dot(x_ref[...], w1_ref[...], preferred_element_type=jnp.float32) + b1
    return jnp.maximum(h1, 0.0)                           # (TB, 128) f32


def _bn_fc2_fc3(hn, w2_ref, w3_ref, b2, b3):
    h2 = jnp.dot(hn.astype(jnp.bfloat16), w2_ref[...],
                 preferred_element_type=jnp.float32) + b2
    h2 = jnp.maximum(h2, 0.0)                             # cols >= fc2_units stay 0
    out = jnp.dot(h2.astype(jnp.bfloat16), w3_ref[...],
                  preferred_element_type=jnp.float32) + b3
    return jnp.tanh(out)                                  # lane-dense (TB, 128)


# --------------------------------------------------------------------------------------
# Fast path: whole (padded) batch in one tile, single grid step
# --------------------------------------------------------------------------------------
def actor_kernel_fused(n_ref, x_ref, w1_ref, w2_ref, w3_ref, vecs_ref, o_ref):
    b1, gamma, beta, b2, b3 = _unpack_vecs(vecs_ref)
    nvalid = n_ref[0]                                     # SMEM scalar: true batch size

    h1 = _fc1_relu(x_ref, w1_ref, b1)

    tb = h1.shape[0]
    row = jax.lax.broadcasted_iota(jnp.int32, (tb, 1), 0)
    h1m = jnp.where(row < nvalid, h1, 0.0)                # drop batch-padding from stats

    inv_n = 1.0 / nvalid.astype(jnp.float32)
    mean = jnp.sum(h1m, axis=0, keepdims=True) * inv_n
    var = jnp.sum(h1m * h1m, axis=0, keepdims=True) * inv_n - mean * mean
    var = jnp.maximum(var, 0.0)                           # guard one-pass cancellation
    scale = gamma * jax.lax.rsqrt(var + BN_EPS)
    shift = beta - mean * scale

    o_ref[...] = _bn_fc2_fc3(h1 * scale + shift, w2_ref, w3_ref, b2, b3)


# --------------------------------------------------------------------------------------
# Multi-tile path: phase 0 = BN stats (h1 staged in VMEM), phase 1 = normalize+fc2+fc3
# --------------------------------------------------------------------------------------
def actor_kernel_tiled(n_ref, x_ref, w1_ref, w2_ref, w3_ref, vecs_ref, o_ref,
                       stat_ref, h1_ref, *, tb):
    phase = pl.program_id(0)
    tile = pl.program_id(1)
    nb = pl.num_programs(1)
    nvalid = n_ref[0]

    b1, gamma, beta, b2, b3 = _unpack_vecs(vecs_ref)
    start = pl.multiple_of(tile * tb, tb)

    @pl.when(phase == 0)
    def _phase0():
        @pl.when(tile == 0)
        def _init():
            stat_ref[...] = jnp.zeros_like(stat_ref)

        h1 = _fc1_relu(x_ref, w1_ref, b1)
        h1_ref[pl.ds(start, tb), :] = h1                  # stage for phase 1 (no recompute)

        @pl.when(tile < nb - 1)                           # interior tiles: no padding rows
        def _acc_full():
            stat_ref[0:1, :] += jnp.sum(h1, axis=0, keepdims=True)
            stat_ref[1:2, :] += jnp.sum(h1 * h1, axis=0, keepdims=True)

        @pl.when(tile == nb - 1)                          # only last tile can hold padding
        def _acc_masked():
            row = tile * tb + jax.lax.broadcasted_iota(jnp.int32, (tb, 1), 0)
            h1m = jnp.where(row < nvalid, h1, 0.0)
            stat_ref[0:1, :] += jnp.sum(h1m, axis=0, keepdims=True)
            stat_ref[1:2, :] += jnp.sum(h1m * h1m, axis=0, keepdims=True)

    @pl.when(phase == 1)
    def _phase1():
        @pl.when(tile == 0)
        def _finalize_stats():                            # BN scale/shift computed once
            inv_n = 1.0 / nvalid.astype(jnp.float32)
            mean = stat_ref[0:1, :] * inv_n
            var = jnp.maximum(stat_ref[1:2, :] * inv_n - mean * mean, 0.0)
            scale = gamma * jax.lax.rsqrt(var + BN_EPS)
            stat_ref[2:3, :] = scale
            stat_ref[3:4, :] = beta - mean * scale

        scale = stat_ref[2:3, :]
        shift = stat_ref[3:4, :]
        h1 = h1_ref[pl.ds(start, tb), :]
        o_ref[...] = _bn_fc2_fc3(h1 * scale + shift, w2_ref, w3_ref, b2, b3)


# --------------------------------------------------------------------------------------
# Wrapper
# --------------------------------------------------------------------------------------
def _next_pow2(n):
    n = max(int(n), 1)
    return 1 << (n - 1).bit_length()


def actor_forward(state, params, *, tb_cap=TB_CAP):
    """state: (B, state_size) float32 -> (B, action_size) float32 (train-mode BN)."""
    B, S = state.shape
    F1 = params["w1"].shape[1]       # fc1_units (must be 128)
    F2 = params["w2"].shape[1]       # fc2_units (<= 128)
    A = params["w3"].shape[1]        # action_size (<= 128)
    assert F1 == LANES, "kernel assumes fc1_units == 128"
    assert F2 <= LANES and A <= LANES

    # ---- pack / pad parameters (wrapper-side layout plumbing) ----
    w1 = params["w1"].astype(jnp.bfloat16)                                     # (S, 128)
    w2 = jnp.zeros((F1, LANES), jnp.bfloat16).at[:, :F2].set(
        params["w2"].astype(jnp.bfloat16))                                     # (128, 128)
    w3 = jnp.zeros((LANES, LANES), jnp.bfloat16).at[:F2, :A].set(
        params["w3"].astype(jnp.bfloat16))                                     # (128, 128)

    vecs = jnp.zeros((8, LANES), jnp.float32)
    vecs = vecs.at[0, :F1].set(params["b1"].reshape(-1))
    vecs = vecs.at[1, :F1].set(params["gamma"].reshape(-1))
    vecs = vecs.at[2, :F1].set(params["beta"].reshape(-1))
    vecs = vecs.at[3, :F2].set(params["b2"].reshape(-1))
    vecs = vecs.at[4, :A].set(params["b3"].reshape(-1))

    # ---- batch tiling: multiples of 16 (bf16 sublane packing) ----
    tb_cap = max(16, (int(tb_cap) // 16) * 16)
    B_pad = max(16, ((B + 15) // 16) * 16)
    if B_pad <= tb_cap:
        TB = _next_pow2(B_pad)       # single tile; pow2 -> fewer distinct compiled shapes
        B_pad = TB
        NB = 1
    else:
        TB = tb_cap
        B_pad = ((B_pad + TB - 1) // TB) * TB
        NB = B_pad // TB

    x = jnp.zeros((B_pad, S), jnp.bfloat16).at[:B].set(state.astype(jnp.bfloat16))
    nvalid = jnp.array([B], jnp.int32)   # SMEM prefetch scalar (no recompile per B)

    flops = 2 * B_pad * (S * F1 + F1 * LANES + LANES * LANES)
    bytes_accessed = (x.size * 2 + (w1.size + w2.size + w3.size) * 2
                      + vecs.size * 4 + B_pad * LANES * 4)
    transcendentals = B_pad * LANES + LANES  # tanh + rsqrt
    cost = pl.CostEstimate(flops=int(flops), transcendentals=int(transcendentals),
                           bytes_accessed=int(bytes_accessed))

    if NB == 1:
        # Single-step fused path: fc1 -> BN stats -> normalize -> fc2 -> fc3 in one step.
        out = pl.pallas_call(
            actor_kernel_fused,
            out_shape=jax.ShapeDtypeStruct((B_pad, LANES), jnp.float32),
            grid_spec=pltpu.PrefetchScalarGridSpec(
                num_scalar_prefetch=1,
                grid=(1,),
                in_specs=[
                    pl.BlockSpec((B_pad, S), lambda i, n: (0, 0)),        # x (bf16)
                    pl.BlockSpec((S, F1), lambda i, n: (0, 0)),           # w1
                    pl.BlockSpec((F1, LANES), lambda i, n: (0, 0)),       # w2 (padded)
                    pl.BlockSpec((LANES, LANES), lambda i, n: (0, 0)),    # w3 (padded)
                    pl.BlockSpec((8, LANES), lambda i, n: (0, 0)),        # packed vectors
                ],
                out_specs=pl.BlockSpec((B_pad, LANES), lambda i, n: (0, 0)),
            ),
            compiler_params=pltpu.CompilerParams(
                dimension_semantics=("arbitrary",),
                vmem_limit_bytes=32 * 1024 * 1024,
            ),
            cost_estimate=cost,
        )(nvalid, x, w1, w2, w3, vecs)
    else:
        h1_bytes = B_pad * LANES * 4
        # TODO(synk): recompute-fc1 fallback (no staged h1) for batches whose staged h1
        # exceeds VMEM (~>60K rows on v7x / ~>200K rows on v5e/v6e).
        vmem_limit = min(112 * 1024 * 1024, 32 * 1024 * 1024 + h1_bytes)
        kernel = functools.partial(actor_kernel_tiled, tb=TB)
        out = pl.pallas_call(
            kernel,
            out_shape=jax.ShapeDtypeStruct((B_pad, LANES), jnp.float32),
            grid_spec=pltpu.PrefetchScalarGridSpec(
                num_scalar_prefetch=1,
                grid=(2, NB),   # (phase, batch tile); phase is the slow axis
                in_specs=[
                    # x streamed during phase 0 only; phase 1 pins block 0 (no re-stream)
                    pl.BlockSpec((TB, S), lambda p, i, n: (i * (1 - p), 0)),
                    pl.BlockSpec((S, F1), lambda p, i, n: (0, 0)),
                    pl.BlockSpec((F1, LANES), lambda p, i, n: (0, 0)),
                    pl.BlockSpec((LANES, LANES), lambda p, i, n: (0, 0)),
                    pl.BlockSpec((8, LANES), lambda p, i, n: (0, 0)),
                ],
                # constant block index during phase 0 -> no stale output writebacks
                out_specs=pl.BlockSpec((TB, LANES), lambda p, i, n: (p * i, 0)),
                scratch_shapes=[
                    pltpu.VMEM((8, LANES), jnp.float32),       # sum / sumsq / scale / shift
                    pltpu.VMEM((B_pad, LANES), jnp.float32),   # staged h1 = relu(fc1(x))
                ],
            ),
            compiler_params=pltpu.CompilerParams(
                dimension_semantics=("arbitrary", "arbitrary"),
                vmem_limit_bytes=int(vmem_limit),
            ),
            cost_estimate=cost,
        )(nvalid, x, w1, w2, w3, vecs)

    return out[:B, :A]


# --------------------------------------------------------------------------------------
# Pure-JAX reference (same bf16 weight/activation quantization as the kernel)
# --------------------------------------------------------------------------------------
def actor_reference(state, params):
    def q(a):
        return a.astype(jnp.bfloat16).astype(jnp.float32)

    x = q(state)
    h1 = jnp.maximum(x @ q(params["w1"]) + params["b1"], 0.0)
    mean = jnp.mean(h1, axis=0, keepdims=True)
    var = jnp.mean((h1 - mean) ** 2, axis=0, keepdims=True)       # biased variance
    hn = (h1 - mean) * jax.lax.rsqrt(var + BN_EPS) * params["gamma"] + params["beta"]
    h2 = jnp.maximum(q(hn) @ q(params["w2"]) + params["b2"], 0.0)
    return jnp.tanh(q(h2) @ q(params["w3"]) + params["b3"])


def init_actor_params(key, state_size, action_size, fc1_units=128, fc2_units=64):
    """Deterministic synthetic init mimicking Actor.__init__/reset_parameters.

    Weights stored transposed relative to PyTorch: (in_features, out_features).
    fc1.weight ~ U(-1/sqrt(fc1_units), ...) (hidden_init uses weight.size()[0] = out),
    fc2.weight ~ U(-3e-3, 3e-3), fc3 keeps default init.
    """
    k = jax.random.split(key, 6)

    lim1 = 1.0 / jnp.sqrt(jnp.float32(fc1_units))
    w1 = jax.random.uniform(k[0], (state_size, fc1_units), jnp.float32, -lim1, lim1)
    b1 = jax.random.uniform(k[1], (1, fc1_units), jnp.float32,
                            -1.0 / jnp.sqrt(jnp.float32(state_size)),
                            1.0 / jnp.sqrt(jnp.float32(state_size)))

    w2 = jax.random.uniform(k[2], (fc1_units, fc2_units), jnp.float32, -3e-3, 3e-3)
    b2 = jax.random.uniform(k[3], (1, fc2_units), jnp.float32,
                            -1.0 / jnp.sqrt(jnp.float32(fc1_units)),
                            1.0 / jnp.sqrt(jnp.float32(fc1_units)))

    lim3 = 1.0 / jnp.sqrt(jnp.float32(fc2_units))
    w3 = jax.random.uniform(k[4], (fc2_units, action_size), jnp.float32, -lim3, lim3)
    b3 = jax.random.uniform(k[5], (1, action_size), jnp.float32, -lim3, lim3)

    gamma = jnp.ones((1, fc1_units), jnp.float32)   # BatchNorm1d defaults
    beta = jnp.zeros((1, fc1_units), jnp.float32)

    return dict(w1=w1, b1=b1, gamma=gamma, beta=beta,
                w2=w2, b2=b2, w3=w3, b3=b3)


if __name__ == "__main__":
    state_size = 24
    action_size = 4

    key = jax.random.PRNGKey(0)
    pkey, xkey, xkey2 = jax.random.split(key, 3)
    params = init_actor_params(pkey, state_size, action_size)

    # --- small batch: single-step fused fast path ---
    batch = 8
    state = jax.random.normal(xkey, (batch, state_size), jnp.float32)
    out = jax.block_until_ready(actor_forward(state, params))
    assert out.shape == (batch, action_size)
    assert bool(jnp.all(jnp.isfinite(out)))
    assert bool(jnp.all(jnp.abs(out) <= 1.0))          # tanh output range
    ref = jax.block_until_ready(actor_reference(state, params))
    assert bool(jnp.all(jnp.abs(out - ref) < 3e-2)), "fast path does not match reference"

    # --- larger, non-tile-aligned batch: exercises the two-phase tiled path ---
    batch2 = 600
    state2 = jax.random.normal(xkey2, (batch2, state_size), jnp.float32)
    out2 = jax.block_until_ready(actor_forward(state2, params, tb_cap=256))
    ref2 = jax.block_until_ready(actor_reference(state2, params))
    assert out2.shape == (batch2, action_size)
    assert bool(jnp.all(jnp.isfinite(out2)))
    assert bool(jnp.all(jnp.abs(out2 - ref2) < 3e-2)), "tiled path does not match reference"

    print("KERNEL_OK")
</pallas_src>

<mosaic_0001>
module attributes {stable_mosaic.version = 11 : i64} {
  func.func @actor_kernel_fused(%arg0: i32, %arg1: memref<1xi32, #tpu.memory_space<smem>>, %arg2: memref<16x24xbf16, #tpu.memory_space<vmem>>, %arg3: memref<24x128xbf16, #tpu.memory_space<vmem>>, %arg4: memref<128x128xbf16, #tpu.memory_space<vmem>>, %arg5: memref<128x128xbf16, #tpu.memory_space<vmem>>, %arg6: memref<8x128xf32, #tpu.memory_space<vmem>>, %arg7: memref<16x128xf32, #tpu.memory_space<vmem>>) attributes {dimension_semantics = [#tpu.dimension_semantics<arbitrary>], iteration_bounds = array<i64: 1>, scalar_prefetch = 1 : i64, scratch_operands = 0 : i64, tpu.core_type = #tpu.core_type<tc>, window_params = [{pipeline_mode = #tpu.pipeline_mode<synchronous>, transform_indices = @transform_0, window_bounds = array<i64: 16, 24>}, {pipeline_mode = #tpu.pipeline_mode<synchronous>, transform_indices = @transform_1, window_bounds = array<i64: 24, 128>}, {pipeline_mode = #tpu.pipeline_mode<synchronous>, transform_indices = @transform_2, window_bounds = array<i64: 128, 128>}, {pipeline_mode = #tpu.pipeline_mode<synchronous>, transform_indices = @transform_3, window_bounds = array<i64: 128, 128>}, {pipeline_mode = #tpu.pipeline_mode<synchronous>, transform_indices = @transform_4, window_bounds = array<i64: 8, 128>}, {pipeline_mode = #tpu.pipeline_mode<synchronous>, transform_indices = @transform_5, window_bounds = array<i64: 16, 128>}]} {
    %c0 = arith.constant 0 : index
    %c0_0 = arith.constant 0 : index
    %0 = vector.load %arg6[%c0, %c0_0] : memref<8x128xf32, #tpu.memory_space<vmem>>, vector<1x128xf32>
    %c1 = arith.constant 1 : index
    %c0_1 = arith.constant 0 : index
    %1 = vector.load %arg6[%c1, %c0_1] : memref<8x128xf32, #tpu.memory_space<vmem>>, vector<1x128xf32>
    %c2 = arith.constant 2 : index
    %c0_2 = arith.constant 0 : index
    %2 = vector.load %arg6[%c2, %c0_2] : memref<8x128xf32, #tpu.memory_space<vmem>>, vector<1x128xf32>
    %c3 = arith.constant 3 : index
    %c0_3 = arith.constant 0 : index
    %3 = vector.load %arg6[%c3, %c0_3] : memref<8x128xf32, #tpu.memory_space<vmem>>, vector<1x128xf32>
    %c4 = arith.constant 4 : index
    %c0_4 = arith.constant 0 : index
    %4 = vector.load %arg6[%c4, %c0_4] : memref<8x128xf32, #tpu.memory_space<vmem>>, vector<1x128xf32>
    %c0_5 = arith.constant 0 : index
    %5 = memref.load %arg1[%c0_5] : memref<1xi32, #tpu.memory_space<smem>>
    %c0_6 = arith.constant 0 : index
    %c0_7 = arith.constant 0 : index
    %6 = vector.load %arg2[%c0_6, %c0_7] : memref<16x24xbf16, #tpu.memory_space<vmem>>, vector<16x24xbf16>
    %c0_8 = arith.constant 0 : index
    %c0_9 = arith.constant 0 : index
    %7 = vector.load %arg3[%c0_8, %c0_9] : memref<24x128xbf16, #tpu.memory_space<vmem>>, vector<24x128xbf16>
    %cst = arith.constant dense<0.000000e+00> : vector<16x128xf32>
    %8 = tpu.matmul %6, %7, %cst {dimension_numbers = #tpu.dot_dimension_numbers<[1], [0], [0], [1], [0, 0, 1, 1], [], []>} : vector<16x24xbf16>, vector<24x128xbf16>, vector<16x128xf32> -> vector<16x128xf32>
    %9 = vector.broadcast %0 : vector<1x128xf32> to vector<16x128xf32>
    %10 = arith.addf %8, %9 : vector<16x128xf32>
    %cst_10 = arith.constant 0.000000e+00 : f32
    %11 = vector.broadcast %cst_10 : f32 to vector<16x128xf32>
    %12 = arith.maximumf %10, %11 : vector<16x128xf32>
    %13 = tpu.iota {dimensions = array<i32: 0>} : vector<16x1xi32>
    %14 = vector.broadcast %5 : i32 to vector<16x1xi32>
    %15 = arith.cmpi slt, %13, %14 : vector<16x1xi32>
    %cst_11 = arith.constant 0.000000e+00 : f32
    %16 = vector.shape_cast %15 : vector<16x1xi1> to vector<16x1xi1>
    %17 = vector.broadcast %16 : vector<16x1xi1> to vector<16x128xi1>
    %18 = vector.broadcast %cst_11 : f32 to vector<16x128xf32>
    %19 = arith.select %17, %12, %18 : vector<16x128xi1>, vector<16x128xf32>
    %20 = arith.sitofp %5 : i32 to f32
    %cst_12 = arith.constant 1.000000e+00 : f32
    %21 = arith.divf %cst_12, %20 : f32
    %cst_13 = arith.constant dense<0.000000e+00> : vector<128xf32>
    %22 = vector.multi_reduction <add>, %19, %cst_13 [0] : vector<16x128xf32> to vector<128xf32>
    %23 = vector.shape_cast %22 : vector<128xf32> to vector<1x128xf32>
    %24 = vector.broadcast %21 : f32 to vector<1x128xf32>
    %25 = arith.mulf %23, %24 : vector<1x128xf32>
    %26 = arith.mulf %19, %19 : vector<16x128xf32>
    %cst_14 = arith.constant dense<0.000000e+00> : vector<128xf32>
    %27 = vector.multi_reduction <add>, %26, %cst_14 [0] : vector<16x128xf32> to vector<128xf32>
    %28 = vector.shape_cast %27 : vector<128xf32> to vector<1x128xf32>
    %29 = vector.broadcast %21 : f32 to vector<1x128xf32>
    %30 = arith.mulf %28, %29 : vector<1x128xf32>
    %31 = arith.mulf %25, %25 : vector<1x128xf32>
    %32 = arith.subf %30, %31 : vector<1x128xf32>
    %cst_15 = arith.constant 0.000000e+00 : f32
    %33 = vector.broadcast %cst_15 : f32 to vector<1x128xf32>
    %34 = arith.maximumf %32, %33 : vector<1x128xf32>
    %cst_16 = arith.constant 9.99999974E-6 : f32
    %35 = vector.broadcast %cst_16 : f32 to vector<1x128xf32>
    %36 = arith.addf %34, %35 : vector<1x128xf32>
    %37 = math.rsqrt %36 : vector<1x128xf32>
    %38 = arith.mulf %1, %37 : vector<1x128xf32>
    %39 = arith.mulf %25, %38 : vector<1x128xf32>
    %40 = arith.subf %2, %39 : vector<1x128xf32>
    %41 = vector.broadcast %38 : vector<1x128xf32> to vector<16x128xf32>
    %42 = arith.mulf %12, %41 : vector<16x128xf32>
    %43 = vector.broadcast %40 : vector<1x128xf32> to vector<16x128xf32>
    %44 = arith.addf %42, %43 : vector<16x128xf32>
    %45 = arith.truncf %44 : vector<16x128xf32> to vector<16x128xbf16>
    %c0_17 = arith.constant 0 : index
    %c0_18 = arith.constant 0 : index
    %46 = vector.load %arg4[%c0_17, %c0_18] : memref<128x128xbf16, #tpu.memory_space<vmem>>, vector<128x128xbf16>
    %cst_19 = arith.constant dense<0.000000e+00> : vector<16x128xf32>
    %47 = tpu.matmul %45, %46, %cst_19 {dimension_numbers = #tpu.dot_dimension_numbers<[1], [0], [0], [1], [0, 0, 1, 1], [], []>} : vector<16x128xbf16>, vector<128x128xbf16>, vector<16x128xf32> -> vector<16x128xf32>
    %48 = vector.broadcast %3 : vector<1x128xf32> to vector<16x128xf32>
    %49 = arith.addf %47, %48 : vector<16x128xf32>
    %cst_20 = arith.constant 0.000000e+00 : f32
    %50 = vector.broadcast %cst_20 : f32 to vector<16x128xf32>
    %51 = arith.maximumf %49, %50 : vector<16x128xf32>
    %52 = arith.truncf %51 : vector<16x128xf32> to vector<16x128xbf16>
    %c0_21 = arith.constant 0 : index
    %c0_22 = arith.constant 0 : index
    %53 = vector.load %arg5[%c0_21, %c0_22] : memref<128x128xbf16, #tpu.memory_space<vmem>>, vector<128x128xbf16>
    %cst_23 = arith.constant dense<0.000000e+00> : vector<16x128xf32>
    %54 = tpu.matmul %52, %53, %cst_23 {dimension_numbers = #tpu.dot_dimension_numbers<[1], [0], [0], [1], [0, 0, 1, 1], [], []>} : vector<16x128xbf16>, vector<128x128xbf16>, vector<16x128xf32> -> vector<16x128xf32>
    %55 = vector.broadcast %4 : vector<1x128xf32> to vector<16x128xf32>
    %56 = arith.addf %54, %55 : vector<16x128xf32>
    %57 = math.tanh %56 : vector<16x128xf32>
    %c0_24 = arith.constant 0 : index
    %c0_25 = arith.constant 0 : index
    %58 = vector.load %arg7[%c0_24, %c0_25] : memref<16x128xf32, #tpu.memory_space<vmem>>, vector<16x128xf32>
    tpu.vector_store %arg7[%c0_24, %c0_25], %57 {strides = array<i32>} : memref<16x128xf32, #tpu.memory_space<vmem>>, vector<16x128xf32>,
    return
  }
  func.func @transform_0(%arg0: i32, %arg1: memref<1xi32, #tpu.memory_space<smem>>) -> (i32, i32) {
    %c0_i32 = arith.constant 0 : i32
    %c0_i32_0 = arith.constant 0 : i32
    %c0_i32_1 = arith.constant 0 : i32
    return %c0_i32, %c0_i32_0 : i32, i32
  }
  func.func @transform_1(%arg0: i32, %arg1: memref<1xi32, #tpu.memory_space<smem>>) -> (i32, i32) {
    %c0_i32 = arith.constant 0 : i32
    %c0_i32_0 = arith.constant 0 : i32
    %c0_i32_1 = arith.constant 0 : i32
    return %c0_i32, %c0_i32_0 : i32, i32
  }
  func.func @transform_2(%arg0: i32, %arg1: memref<1xi32, #tpu.memory_space<smem>>) -> (i32, i32) {
    %c0_i32 = arith.constant 0 : i32
    %c0_i32_0 = arith.constant 0 : i32
    %c0_i32_1 = arith.constant 0 : i32
    return %c0_i32, %c0_i32_0 : i32, i32
  }
  func.func @transform_3(%arg0: i32, %arg1: memref<1xi32, #tpu.memory_space<smem>>) -> (i32, i32) {
    %c0_i32 = arith.constant 0 : i32
    %c0_i32_0 = arith.constant 0 : i32
    %c0_i32_1 = arith.constant 0 : i32
    return %c0_i32, %c0_i32_0 : i32, i32
  }
  func.func @transform_4(%arg0: i32, %arg1: memref<1xi32, #tpu.memory_space<smem>>) -> (i32, i32) {
    %c0_i32 = arith.constant 0 : i32
    %c0_i32_0 = arith.constant 0 : i32
    %c0_i32_1 = arith.constant 0 : i32
    return %c0_i32, %c0_i32_0 : i32, i32
  }
  func.func @transform_5(%arg0: i32, %arg1: memref<1xi32, #tpu.memory_space<smem>>) -> (i32, i32) {
    %c0_i32 = arith.constant 0 : i32
    %c0_i32_0 = arith.constant 0 : i32
    %c0_i32_1 = arith.constant 0 : i32
    return %c0_i32, %c0_i32_0 : i32, i32
  }
}

</mosaic_0001>

<llo_original>
// kernel: tpu_custom_call.1
$region0: #{tpu_custom_call.1}
  #allocation0 [shape = 'u32[]', space=smem, size = 0x4, offset = 0x4, fixed_abs, tag = 'smem constant byte address 0x4 - core index']
  #allocation1 [shape = 'u32[144,128]{1,0:T(1,128)}', space=vmem, size = 0x12000, scoped, tag = 'internal scratch']
  #allocation2 [shape = 's32[1]{0}', space=sflag, size = 0x4, scoped, tag = 'scoped memory for tpu_custom_call.1']
  #allocation3 [shape = 's32[1]{0:T(128)S(6)}', space=smem, size = 0x200, scoped, tag = 'prefetched SMEM operand 0']
  %s0 = inlined_call_operand.<no memory space> [shape: s32[1], index: 0, kind: input, shape index: {}]
  %s1 = inlined_call_operand.hbm [shape: bf16[16,24], index: 1, kind: input, shape index: {}]
  %s2 = inlined_call_operand.hbm [shape: bf16[24,128], index: 2, kind: input, shape index: {}]
  %s3 = inlined_call_operand.hbm [shape: bf16[128,128], index: 3, kind: input, shape index: {}]
  %s4 = inlined_call_operand.hbm [shape: bf16[128,128], index: 4, kind: input, shape index: {}]
  %s5 = inlined_call_operand.vmem [shape: f32[8,128], index: 5, kind: input, shape index: {}]
  %s6 = inlined_call_operand.hbm [shape: f32[16,128], index: 6, kind: output, shape index: {}]
  %s7 = sld [smem:[#allocation0]]
  $region46: #{tpu_custom_call.1} parent=0
    _
  %s9 = ssub.s32 1, %s7
  %s10 = scalar_select 0, %s9, %s7
  %11 = sst [smem:[#allocation3]] %s0
  $region1: #{tpu_custom_call.1} parent=0
    #allocation4 [shape = 'u8[4096]{0}', space=vmem, size = 0x1000, scoped, tag = 'input window, operand 1, single buffered']
    #allocation5 [shape = 's32[1]{0}', space=sflag, size = 0x4, scoped, tag = 'scoped memory for tpu_custom_call.1']
    #allocation6 [shape = 's32[1]{0}', space=sflag, size = 0x4, scoped, tag = 'scoped memory for tpu_custom_call.1']
    #allocation7 [shape = 'u8[6144]{0}', space=vmem, size = 0x1800, scoped, tag = 'input window, operand 2, single buffered']
    #allocation8 [shape = 's32[1]{0}', space=sflag, size = 0x4, scoped, tag = 'scoped memory for tpu_custom_call.1']
    #allocation9 [shape = 'u8[32768]{0}', space=vmem, size = 0x8000, scoped, tag = 'input window, operand 3, single buffered']
    #allocation10 [shape = 'u8[32768]{0}', space=vmem, size = 0x8000, scoped, tag = 'input window, operand 4, single buffered']
    #allocation11 [shape = 's32[1]{0}', space=sflag, size = 0x4, scoped, tag = 'scoped memory for tpu_custom_call.1']
    #allocation12 [shape = 'u8[8192]{0}', space=vmem, size = 0x2000, scoped, tag = 'output window, operand 0, single buffered']
    %12 = vsyncpa [#allocation5], 0
    %13 = vsyncpa [#allocation8], 0
    %14 = vsyncpa [#allocation11], 0
    %15 = vsyncpa [#allocation6], 0
    // Predicated region
    $region2: #{tpu_custom_call.1} parent=1 // pred_check
      _
    $region3: #{tpu_custom_call.1} parent=1 // pred_check_branch
      %17 = sbr.rel (0) target = $region5
    $region4: #{tpu_custom_call.1} parent=1 // pred_region
      %s19 = ssub.s32 128, 128
      %20 = vsyncadd [#allocation5], %s19
      %s21 = sshll.u32 [#allocation4], 4
      %s22 = int_to_ptr.vmem [resolvable:$true] %s21
      %27 = dma.hbm_to_vmem [thread:$0]  %s1, 128, %s22, [#allocation5], 64, 64, 4
    $region5: #{tpu_custom_call.1} parent=1 // pred_fallthru
      _
    // Predicated region
    $region6: #{tpu_custom_call.1} parent=1 // pred_check
      _
    $region7: #{tpu_custom_call.1} parent=1 // pred_check_branch
      %29 = sbr.rel (0) target = $region9
    $region8: #{tpu_custom_call.1} parent=1 // pred_region
      %s31 = ssub.s32 192, 192
      %32 = vsyncadd [#allocation8], %s31
      %s33 = sshll.u32 [#allocation7], 4
      %s34 = int_to_ptr.vmem [resolvable:$true] %s33
      %39 = dma.hbm_to_vmem [thread:$0]  %s2, 192, %s34, [#allocation8], 64, 64, 4
    $region9: #{tpu_custom_call.1} parent=1 // pred_fallthru
      _
    // Predicated region
    $region10: #{tpu_custom_call.1} parent=1 // pred_check
      _
    $region11: #{tpu_custom_call.1} parent=1 // pred_check_branch
      %41 = sbr.rel (0) target = $region13
    $region12: #{tpu_custom_call.1} parent=1 // pred_region
      %s43 = ssub.s32 1024, 1024
      %44 = vsyncadd [#allocation8], %s43
      %s45 = sshll.u32 [#allocation9], 4
      %s46 = int_to_ptr.vmem [resolvable:$true] %s45
      %51 = dma.hbm_to_vmem [thread:$0]  %s3, 1024, %s46, [#allocation8], 64, 64, 4
    $region13: #{tpu_custom_call.1} parent=1 // pred_fallthru
      _
    // Predicated region
    $region14: #{tpu_custom_call.1} parent=1 // pred_check
      _
    $region15: #{tpu_custom_call.1} parent=1 // pred_check_branch
      %53 = sbr.rel (0) target = $region17
    $region16: #{tpu_custom_call.1} parent=1 // pred_region
      %s55 = ssub.s32 1024, 1024
      %56 = vsyncadd [#allocation11], %s55
      %s57 = sshll.u32 [#allocation10], 4
      %s58 = int_to_ptr.vmem [resolvable:$true] %s57
      %63 = dma.hbm_to_vmem [thread:$0]  %s4, 1024, %s58, [#allocation11], 64, 64, 4
    $region17: #{tpu_custom_call.1} parent=1 // pred_fallthru
      _
    // Predicated region
    $region18: #{tpu_custom_call.1} parent=1 // pred_check
      _
    $region19: #{tpu_custom_call.1} parent=1 // pred_check_branch
      %65 = sbr.rel (0) target = $region21
    $region20: #{tpu_custom_call.1} parent=1 // pred_region
      _
    $region21: #{tpu_custom_call.1} parent=1 // pred_fallthru
      _
    // Predicated region
    $region22: #{tpu_custom_call.1} parent=1 // pred_check
      _
    $region23: #{tpu_custom_call.1} parent=1 // pred_check_branch
      %67 = sbr.rel (0) target = $region25
    $region24: #{tpu_custom_call.1} parent=1 // pred_region
      %68 = dma.done [#allocation5], 128
    $region25: #{tpu_custom_call.1} parent=1 // pred_fallthru
      _
    // Predicated region
    $region26: #{tpu_custom_call.1} parent=1 // pred_check
      _
    $region27: #{tpu_custom_call.1} parent=1 // pred_check_branch
      %70 = sbr.rel (0) target = $region29
    $region28: #{tpu_custom_call.1} parent=1 // pred_region
      %71 = dma.done [#allocation8], 192
    $region29: #{tpu_custom_call.1} parent=1 // pred_fallthru
      _
    // Predicated region
    $region30: #{tpu_custom_call.1} parent=1 // pred_check
      _
    $region31: #{tpu_custom_call.1} parent=1 // pred_check_branch
      %73 = sbr.rel (0) target = $region33
    $region32: #{tpu_custom_call.1} parent=1 // pred_region
      %74 = dma.done [#allocation8], 1024
    $region33: #{tpu_custom_call.1} parent=1 // pred_fallthru
      _
    // Predicated region
    $region34: #{tpu_custom_call.1} parent=1 // pred_check
      _
    $region35: #{tpu_custom_call.1} parent=1 // pred_check_branch
      %76 = sbr.rel (0) target = $region37
    $region36: #{tpu_custom_call.1} parent=1 // pred_region
      %77 = dma.done [#allocation11], 1024
    $region37: #{tpu_custom_call.1} parent=1 // pred_fallthru
      _
    %v79 = vld [vmem:[%s5] sm:$0x1]
    %v80 = vld [vmem:[%s5 + $0x1] sm:$0x1]
    %v81 = vld [vmem:[%s5 + $0x2] sm:$0x1]
    %v82 = vld [vmem:[%s5 + $0x3] sm:$0x1]
    %v83 = vld [vmem:[%s5 + $0x4] sm:$0x1]
    %s84 = sld [smem:[#allocation3]]
    %v85 = vld [vmem:[#allocation4] sm:$0xf]
    %v86 = vld [vmem:[#allocation4 + $0x4] sm:$0xf]
    %v87 = vld [vmem:[#allocation7] sm:$0xf]
    %v88 = vld [vmem:[#allocation7 + $0x4] sm:$0xf]
    %v89 = vld [vmem:[#allocation7 + $0x8] sm:$0xf]
    %v90 = vlaneseq
    %v91 = vshrl.u32 %v90, 7
    %v92 = vsub.s32 0, %v91
    %v93 = vrot.slane %v79, %v92
    %v96 = vunpack.c.l.b16 %v85
    %v97 = vunpack.c.l.b16 %v86
    %v98 = vpack.c.b16 %v97, %v96
    %v102 = vunpack.c.l.b16 %v87
    %v103 = vunpack.c.l.b16 %v88
    %v104 = vunpack.c.l.b16 %v89
    %v105 = vpack.c.b16 %v103, %v102
    %v106 = vpack.c.b16 %v104, %v104
    %vm108 = vcmask 195584
    %v110 = vsel %vm108, %v98, 0
    %vm112 = vcmask 1043456
    %v114 = vsel %vm112, %v106, 0
    %116 = vmatprep.subr.bf16.mxu0 0
    %117 = vmatpush1.bf16.msra.mxu0 %v105
    %118 = vmatprep.subr.bf16.mxu0 0
    %119 = vmatpush1.bf16.msra.mxu0 %v114
    %120 = vmatprep.subr.bf16.mxu0 0
    %121 = vmatpush1.bf16.msra.mxu0 0
    %122 = vmatprep.subr.bf16.mxu0 0
    %123 = vmatpush1.bf16.msra.mxu0 0
    %124 = vmatprep.subr.bf16.mxu0 0
    %125 = vmatpush1.bf16.msra.mxu0 0
    %126 = vmatprep.subr.bf16.mxu0 0
    %127 = vmatpush1.bf16.msra.mxu0 0
    %128 = vmatprep.subr.bf16.mxu0 0
    %129 = vmatpush1.bf16.msra.mxu0 0
    %130 = vmatprep.subr.bf16.mxu0 0
    %131 = vmatpush1.bf16.msra.mxu0 0
    %132 = vmatprep.subr.bf16.mxu0 0
    %133 = vmatpush1.bf16.msra.mxu0 0
    %134 = vmatprep.subr.bf16.mxu0 0
    %135 = vmatpush1.bf16.msra.mxu0 0
    %136 = vmatprep.subr.bf16.mxu0 0
    %137 = vmatpush1.bf16.msra.mxu0 0
    %138 = vmatprep.subr.bf16.mxu0 0
    %139 = vmatpush1.bf16.msra.mxu0 0
    %140 = vmatprep.subr.bf16.mxu0 0
    %141 = vmatpush1.bf16.msra.mxu0 0
    %142 = vmatprep.subr.bf16.mxu0 0
    %143 = vmatpush1.bf16.msra.mxu0 0
    %144 = vmatprep.subr.bf16.mxu0 0
    %145 = vmatpush1.bf16.msra.mxu0 0
    %146 = vmatprep.subr.bf16.mxu0 0
    %147 = vmatpush1.bf16.msra.mxu0 0
    %148 = vmatprep.mubr.bf16.mxu0 0
    %149 = vmatmul.mubr.bf16.gmra.mrb[0].mxu0 %v110
    %v150 = vpop.f32.mrb[0].mxu0
    %v151 = vadd.f32 %v93, %v150
    %v152 = vpop.f32.mrb[0].mxu0
    %v153 = vpop.f32.mrb[0].mxu0
    %v154 = vadd.f32 %v93, %v153
    %v155 = vpop.f32.mrb[0].mxu0
    %156 = vdwg.mxu0
    %v157 = vmax.f32 %v151, 0.0
    %v158 = vmax.f32 %v154, 0.0
    %v159 = vlaneseq
    %v160 = vshrl.u32 %v159, 7
    %v161 = vadd.s32 %v160, 8
    %v162 = vstv %s84
    %vm163 = vcmp.lt.s32.totalorder %v160, %v162
    %vm164 = vcmp.lt.s32.totalorder %v161, %v162
    %v165 = vsel %vm163, 1, 0
    %v166 = vsel %vm164, 1, 0
    %vm167 = vcmp.eq.s32.totalorder %v165, 1
    %vm168 = vcmp.eq.s32.totalorder %v166, 1
    %v169 = vsel %vm167, %v157, 0.0
    %v170 = vsel %vm168, %v158, 0.0
    %s171 = scvt.s32.f32 %s84
    %v172 = vstv %s171
    %v173 = vrcp.pop %v172
    %s174 = vtos %v173
    %v175 = vadd.f32 %v169, %v170
    %v176 = vrot.slane %v175, 4
    %v177 = vadd.f32 %v175, %v176
    %v178 = vrot.slane %v177, 2
    %v179 = vadd.f32 %v177, %v178
    %v180 = vrot.slane %v179, 1
    %v181 = vadd.f32 %v179, %v180
    %v182 = vstv %s174
    %v183 = vmul.f32 %v181, %v182
    %v184 = vmul.f32 %v169, %v169
    %v185 = vmul.f32 %v170, %v170
    %v186 = vadd.f32 %v184, %v185
    %v187 = vrot.slane %v186, 4
    %v188 = vadd.f32 %v186, %v187
    %v189 = vrot.slane %v188, 2
    %v190 = vadd.f32 %v188, %v189
    %v191 = vrot.slane %v190, 1
    %v192 = vadd.f32 %v190, %v191
    %v193 = vmul.f32 %v192, %v182
    %v194 = vmul.f32 %v183, %v183
    %v195 = vsub.f32 %v193, %v194
    %v196 = vmax.f32 %v195, 0.0
    %v197 = vadd.f32 %v196, 1e-05
    %v198 = vrsqrt.pop %v197
    %v199 = vmul.f32 %v80, %v198
    %v200 = vmul.f32 %v183, %v199
    %v201 = vsub.f32 %v81, %v200
    %v202 = vlaneseq
    %v203 = vshrl.u32 %v202, 7
    %v204 = vsub.s32 0, %v203
    %v205 = vrot.slane %v199, %v204
    %v206 = vmul.f32 %v157, %v205
    %v207 = vmul.f32 %v158, %v205
    %v208 = vlaneseq
    %v209 = vshrl.u32 %v208, 7
    %v210 = vsub.s32 0, %v209
    %v211 = vrot.slane %v201, %v210
    %v212 = vadd.f32 %v206, %v211
    %v213 = vadd.f32 %v207, %v211
    %v214 = vpack.c.bf16 %v213, %v212
    %v215 = vld [vmem:[#allocation9] sm:$0xf]
    %v216 = vld [vmem:[#allocation9 + $0x4] sm:$0xf]
    %v217 = vld [vmem:[#allocation9 + $0x8] sm:$0xf]
    %v218 = vld [vmem:[#allocation9 + $0xc] sm:$0xf]
    %v219 = vld [vmem:[#allocation9 + $0x10] sm:$0xf]
    %v220 = vld [vmem:[#allocation9 + $0x14] sm:$0xf]
    %v221 = vld [vmem:[#allocation9 + $0x18] sm:$0xf]
    %v222 = vld [vmem:[#allocation9 + $0x1c] sm:$0xf]
    %v223 = vld [vmem:[#allocation9 + $0x20] sm:$0xf]
    %v224 = vld [vmem:[#allocation9 + $0x24] sm:$0xf]
    %v225 = vld [vmem:[#allocation9 + $0x28] sm:$0xf]
    %v226 = vld [vmem:[#allocation9 + $0x2c] sm:$0xf]
    %v227 = vld [vmem:[#allocation9 + $0x30] sm:$0xf]
    %v228 = vld [vmem:[#allocation9 + $0x34] sm:$0xf]
    %v229 = vld [vmem:[#allocation9 + $0x38] sm:$0xf]
    %v230 = vld [vmem:[#allocation9 + $0x3c] sm:$0xf]
    %v231 = vlaneseq
    %v232 = vshrl.u32 %v231, 7
    %v233 = vsub.s32 0, %v232
    %v234 = vrot.slane %v82, %v233
    %v251 = vunpack.c.l.b16 %v215
    %v252 = vunpack.c.l.b16 %v216
    %v253 = vunpack.c.l.b16 %v217
    %v254 = vunpack.c.l.b16 %v218
    %v255 = vunpack.c.l.b16 %v219
    %v256 = vunpack.c.l.b16 %v220
    %v257 = vunpack.c.l.b16 %v221
    %v258 = vunpack.c.l.b16 %v222
    %v259 = vunpack.c.l.b16 %v223
    %v260 = vunpack.c.l.b16 %v224
    %v261 = vunpack.c.l.b16 %v225
    %v262 = vunpack.c.l.b16 %v226
    %v263 = vunpack.c.l.b16 %v227
    %v264 = vunpack.c.l.b16 %v228
    %v265 = vunpack.c.l.b16 %v229
    %v266 = vunpack.c.l.b16 %v230
    %v267 = vpack.c.b16 %v252, %v251
    %v268 = vpack.c.b16 %v254, %v253
    %v269 = vpack.c.b16 %v256, %v255
    %v270 = vpack.c.b16 %v258, %v257
    %v271 = vpack.c.b16 %v260, %v259
    %v272 = vpack.c.b16 %v262, %v261
    %v273 = vpack.c.b16 %v264, %v263
    %v274 = vpack.c.b16 %v266, %v265
    %283 = vmatprep.subr.bf16.mxu0 0
    %284 = vmatpush1.bf16.msra.mxu0 %v267
    %285 = vmatprep.subr.bf16.mxu0 0
    %286 = vmatpush1.bf16.msra.mxu0 %v268
    %287 = vmatprep.subr.bf16.mxu0 0
    %288 = vmatpush1.bf16.msra.mxu0 %v269
    %289 = vmatprep.subr.bf16.mxu0 0
    %290 = vmatpush1.bf16.msra.mxu0 %v270
    %291 = vmatprep.subr.bf16.mxu0 0
    %292 = vmatpush1.bf16.msra.mxu0 %v271
    %293 = vmatprep.subr.bf16.mxu0 0
    %294 = vmatpush1.bf16.msra.mxu0 %v272
    %295 = vmatprep.subr.bf16.mxu0 0
    %296 = vmatpush1.bf16.msra.mxu0 %v273
    %297 = vmatprep.subr.bf16.mxu0 0
    %298 = vmatpush1.bf16.msra.mxu0 %v274
    %299 = vmatprep.subr.bf16.mxu0 0
    %300 = vmatpush1.bf16.msra.mxu0 0
    %301 = vmatprep.subr.bf16.mxu0 0
    %302 = vmatpush1.bf16.msra.mxu0 0
    %303 = vmatprep.subr.bf16.mxu0 0
    %304 = vmatpush1.bf16.msra.mxu0 0
    %305 = vmatprep.subr.bf16.mxu0 0
    %306 = vmatpush1.bf16.msra.mxu0 0
    %307 = vmatprep.subr.bf16.mxu0 0
    %308 = vmatpush1.bf16.msra.mxu0 0
    %309 = vmatprep.subr.bf16.mxu0 0
    %310 = vmatpush1.bf16.msra.mxu0 0
    %311 = vmatprep.subr.bf16.mxu0 0
    %312 = vmatpush1.bf16.msra.mxu0 0
    %313 = vmatprep.subr.bf16.mxu0 0
    %314 = vmatpush1.bf16.msra.mxu0 0
    %315 = vmatprep.mubr.bf16.mxu0 0
    %316 = vmatmul.mubr.bf16.gmra.mrb[0].mxu0 %v214
    %v317 = vpop.f32.mrb[0].mxu0
    %v318 = vadd.f32 %v234, %v317
    %v319 = vpop.f32.mrb[0].mxu0
    %v320 = vpop.f32.mrb[0].mxu0
    %v321 = vadd.f32 %v234, %v320
    %v322 = vpop.f32.mrb[0].mxu0
    %323 = vdwg.mxu0
    %v324 = vmax.f32 %v318, 0.0
    %v325 = vmax.f32 %v321, 0.0
    %v326 = vpack.c.bf16 %v325, %v324
    %v327 = vld [vmem:[#allocation10] sm:$0xf]
    %v328 = vld [vmem:[#allocation10 + $0x4] sm:$0xf]
    %v329 = vld [vmem:[#allocation10 + $0x8] sm:$0xf]
    %v330 = vld [vmem:[#allocation10 + $0xc] sm:$0xf]
    %v331 = vld [vmem:[#allocation10 + $0x10] sm:$0xf]
    %v332 = vld [vmem:[#allocation10 + $0x14] sm:$0xf]
    %v333 = vld [vmem:[#allocation10 + $0x18] sm:$0xf]
    %v334 = vld [vmem:[#allocation10 + $0x1c] sm:$0xf]
    %v335 = vld [vmem:[#allocation10 + $0x20] sm:$0xf]
    %v336 = vld [vmem:[#allocation10 + $0x24] sm:$0xf]
    %v337 = vld [vmem:[#allocation10 + $0x28] sm:$0xf]
    %v338 = vld [vmem:[#allocation10 + $0x2c] sm:$0xf]
    %v339 = vld [vmem:[#allocation10 + $0x30] sm:$0xf]
    %v340 = vld [vmem:[#allocation10 + $0x34] sm:$0xf]
    %v341 = vld [vmem:[#allocation10 + $0x38] sm:$0xf]
    %v342 = vld [vmem:[#allocation10 + $0x3c] sm:$0xf]
    %v343 = vlaneseq
    %v344 = vshrl.u32 %v343, 7
    %v345 = vsub.s32 0, %v344
    %v346 = vrot.slane %v83, %v345
    %v363 = vunpack.c.l.b16 %v327
    %v364 = vunpack.c.l.b16 %v328
    %v365 = vunpack.c.l.b16 %v329
    %v366 = vunpack.c.l.b16 %v330
    %v367 = vunpack.c.l.b16 %v331
    %v368 = vunpack.c.l.b16 %v332
    %v369 = vunpack.c.l.b16 %v333
    %v370 = vunpack.c.l.b16 %v334
    %v371 = vunpack.c.l.b16 %v335
    %v372 = vunpack.c.l.b16 %v336
    %v373 = vunpack.c.l.b16 %v337
    %v374 = vunpack.c.l.b16 %v338
    %v375 = vunpack.c.l.b16 %v339
    %v376 = vunpack.c.l.b16 %v340
    %v377 = vunpack.c.l.b16 %v341
    %v378 = vunpack.c.l.b16 %v342
    %v379 = vpack.c.b16 %v364, %v363
    %v380 = vpack.c.b16 %v366, %v365
    %v381 = vpack.c.b16 %v368, %v367
    %v382 = vpack.c.b16 %v370, %v369
    %v383 = vpack.c.b16 %v372, %v371
    %v384 = vpack.c.b16 %v374, %v373
    %v385 = vpack.c.b16 %v376, %v375
    %v386 = vpack.c.b16 %v378, %v377
    %395 = vmatprep.subr.bf16.mxu0 0
    %396 = vmatpush1.bf16.msra.mxu0 %v379
    %397 = vmatprep.subr.bf16.mxu0 0
    %398 = vmatpush1.bf16.msra.mxu0 %v380
    %399 = vmatprep.subr.bf16.mxu0 0
    %400 = vmatpush1.bf16.msra.mxu0 %v381
    %401 = vmatprep.subr.bf16.mxu0 0
    %402 = vmatpush1.bf16.msra.mxu0 %v382
    %403 = vmatprep.subr.bf16.mxu0 0
    %404 = vmatpush1.bf16.msra.mxu0 %v383
    %405 = vmatprep.subr.bf16.mxu0 0
    %406 = vmatpush1.bf16.msra.mxu0 %v384
    %407 = vmatprep.subr.bf16.mxu0 0
    %408 = vmatpush1.bf16.msra.mxu0 %v385
    %409 = vmatprep.subr.bf16.mxu0 0
    %410 = vmatpush1.bf16.msra.mxu0 %v386
    %411 = vmatprep.subr.bf16.mxu0 0
    %412 = vmatpush1.bf16.msra.mxu0 0
    %413 = vmatprep.subr.bf16.mxu0 0
    %414 = vmatpush1.bf16.msra.mxu0 0
    %415 = vmatprep.subr.bf16.mxu0 0
    %416 = vmatpush1.bf16.msra.mxu0 0
    %417 = vmatprep.subr.bf16.mxu0 0
    %418 = vmatpush1.bf16.msra.mxu0 0
    %419 = vmatprep.subr.bf16.mxu0 0
    %420 = vmatpush1.bf16.msra.mxu0 0
    %421 = vmatprep.subr.bf16.mxu0 0
    %422 = vmatpush1.bf16.msra.mxu0 0
    %423 = vmatprep.subr.bf16.mxu0 0
    %424 = vmatpush1.bf16.msra.mxu0 0
    %425 = vmatprep.subr.bf16.mxu0 0
    %426 = vmatpush1.bf16.msra.mxu0 0
    %427 = vmatprep.mubr.bf16.mxu0 0
    %428 = vmatmul.mubr.bf16.gmra.mrb[0].mxu0 %v326
    %v429 = vpop.f32.mrb[0].mxu0
    %v430 = vadd.f32 %v346, %v429
    %v431 = vpop.f32.mrb[0].mxu0
    %v432 = vpop.f32.mrb[0].mxu0
    %v433 = vadd.f32 %v346, %v432
    %v434 = vpop.f32.mrb[0].mxu0
    %435 = vdwg.mxu0
    %v436 = vtanh.pop %v430
    %v437 = vtanh.pop %v433
    %438 = vst [vmem:[#allocation12] sm:$0xff] %v436
    %439 = vst [vmem:[#allocation12 + $0x8] sm:$0xff] %v437
    // Predicated region
    $region38: #{tpu_custom_call.1} parent=1 // pred_check
      _
    $region39: #{tpu_custom_call.1} parent=1 // pred_check_branch
      %441 = sbr.rel (0) target = $region41
    $region40: #{tpu_custom_call.1} parent=1 // pred_region
      %s443 = ssub.s32 256, 256
      %444 = vsyncadd [#allocation6], %s443
      %s445 = sshll.u32 [#allocation12], 4
      %s446 = int_to_ptr.vmem [resolvable:$true] %s445
      %451 = dma.vmem_to_hbm [thread:$0]  %s446, 256, %s6, [#allocation6], 128, 128, 8
    $region41: #{tpu_custom_call.1} parent=1 // pred_fallthru
      _
    // Predicated region
    $region42: #{tpu_custom_call.1} parent=1 // pred_check
      _
    $region43: #{tpu_custom_call.1} parent=1 // pred_check_branch
      %453 = sbr.rel (0) target = $region45
    $region44: #{tpu_custom_call.1} parent=1 // pred_region
      %454 = dma.done [#allocation6], 256
    $region45: #{tpu_custom_call.1} parent=1 // pred_fallthru
      _
    %455 = vsyncpa [#allocation5], 1
    %456 = vsyncpa [#allocation8], 1
    %457 = vsyncpa [#allocation11], 1
    %458 = vsyncpa [#allocation6], 1

</llo_original>
